<compile_context>
chip_gen: v6e
topology: v6e:2x2x1
jax: 0.10.0
libtpu: 0.0.40
codegen_flags: <defaults>
</compile_context>

<pallas_src>
import functools

import jax
import jax.numpy as jnp
from jax.experimental import pallas as pl
from jax.experimental.pallas import tpu as pltpu


def _round_up(x, m):
    return ((x + m - 1) // m) * m


def _vmem_capacity_bytes():
    try:
        info = pltpu.get_tpu_info()
        cap = int(getattr(info, "vmem_capacity_bytes", 0))
        if cap > 0:
            return cap
    except Exception:
        pass
    return 64 << 20   # conservative fallback (v7x per-TensorCore VMEM)


def _vmem_limit_bytes():
    # ~102 MiB on v5e/v6e (128 MiB physical), ~51 MiB on v7x (64 MiB physical);
    # headroom left for compiler-internal scratch / semaphores.
    return int(0.80 * _vmem_capacity_bytes())


def _pad_rows_cols(x, rows, cols=None):
    r, c = x.shape
    cols = c if cols is None else cols
    if r == rows and c == cols:
        return x
    return jnp.pad(x, ((0, rows - r), (0, cols - c)))


# --------------------------------------------------------------------------
# Fused path: A_hat resident in VMEM, all layers + prefix-mean in one kernel.
# Reads the dominant N^2 operand from HBM exactly once.
# --------------------------------------------------------------------------
def _fused_hop_kernel(a_ref, e0_ref, embed_ref, *, n_layers):
    a = a_ref[...]                       # (P, P) bf16, resident in VMEM
    e = e0_ref[...]                      # (P, D) f32 ego embeddings
    embed_ref[0] = e                     # embed[0] == raw ego embeddings
    acc = e
    n_hops = min(n_layers, 4)            # hops beyond 4 never reach the output
    for h in range(1, 5):                # static unroll; output always 5 rows
        if h <= n_hops:
            e = jnp.dot(a, e.astype(jnp.bfloat16),
                        preferred_element_type=jnp.float32)
            acc = acc + e
            embed_ref[h] = acc * jnp.float32(1.0 / (h + 1))
        else:                            # torch: mean over all available hops
            embed_ref[h] = acc * jnp.float32(1.0 / (n_hops + 1))


def pallas_make_hop_fused(a_p, e0_p, *, n_layers, vmem_limit_bytes):
    P, _ = a_p.shape
    _, D = e0_p.shape
    # Grid-less pallas_call: whole operands live in VMEM, single-buffered.
    return pl.pallas_call(
        functools.partial(_fused_hop_kernel, n_layers=n_layers),
        out_shape=jax.ShapeDtypeStruct((5, P, D), jnp.float32),
        compiler_params=pltpu.CompilerParams(
            vmem_limit_bytes=vmem_limit_bytes),
    )(a_p, e0_p)


# --------------------------------------------------------------------------
# Tiled path kernel 1: propagation  O = A_hat @ E
#   A_hat: (P, P) bf16, streamed in (tm, tk) tiles
#   E    : (P, D) bf16, fully VMEM-resident when it fits, else (tk, D) tiles
#   O    : (P, D) f32 accumulated in the output block  +  bf16 copy emitted
#          in the epilogue (feeds the next layer, no standalone XLA cast).
# --------------------------------------------------------------------------
def _prop_kernel_resident(a_ref, e_ref, o_ref, ob_ref, *, tk):
    k = pl.program_id(1)

    @pl.when(k == 0)
    def _():
        o_ref[...] = jnp.zeros_like(o_ref)

    start = pl.multiple_of(k * tk, tk)
    o_ref[...] += jnp.dot(a_ref[...], e_ref[pl.ds(start, tk), :],
                          preferred_element_type=jnp.float32)

    @pl.when(k == pl.num_programs(1) - 1)
    def _():
        ob_ref[...] = o_ref[...].astype(jnp.bfloat16)


def _prop_kernel_streamed(a_ref, e_ref, o_ref, ob_ref):
    k = pl.program_id(1)

    @pl.when(k == 0)
    def _():
        o_ref[...] = jnp.zeros_like(o_ref)

    o_ref[...] += jnp.dot(a_ref[...], e_ref[...],
                          preferred_element_type=jnp.float32)

    @pl.when(k == pl.num_programs(1) - 1)
    def _():
        ob_ref[...] = o_ref[...].astype(jnp.bfloat16)


def _plan_propagation(N, D, vmem_limit_bytes):
    """Pick (tm, tk, padded P, resident-E flag) for the tiled propagate."""
    budget = int(0.85 * vmem_limit_bytes)
    if N >= 2048:
        tk = 2048                  # A lane axis / E sublane axis
        tm = 1024                  # >= 2 M-blocks -> megacore sharding on v7x
        P = _round_up(N, 2048)
    else:
        P = _round_up(N, 128)      # lane-aligned; 128 is a multiple of 16 (bf16)
        tm = tk = P
    out_bytes = 2 * tm * D * 4 + 2 * tm * D * 2    # f32 + bf16 out blocks, 2-buffered
    a_bytes = 2 * tm * tk * 2                      # A tile, double-buffered
    # Resident E counted at 2 buffers: the constant-index block may still be
    # double-buffered by the pipeliner, so never under-count (avoids VMEM OOM).
    e_res_bytes = 2 * P * D * 2
    resident = (e_res_bytes + a_bytes + out_bytes) <= budget
    if not resident:
        # Streamed fallback: E is re-read once per M pass; the largest tm that
        # fits VMEM minimises that extra HBM traffic.
        tm2 = 2048
        if P % tm2 == 0 and (2 * tm2 * tk * 2 + 2 * tk * D * 2
                             + 2 * tm2 * D * 4 + 2 * tm2 * D * 2) <= budget:
            tm = tm2
    return tm, tk, P, resident


def pallas_propagate(a_p, e_p, *, tm, tk, resident, vmem_limit_bytes):
    """One propagation step on padded operands.  Returns (O_f32, O_bf16)."""
    P, Pk = a_p.shape
    _, D = e_p.shape
    grid = (P // tm, Pk // tk)

    if resident:
        # Constant index_map -> E is DMA'd once per core; only A_hat streams.
        in_specs = [
            pl.BlockSpec((tm, tk), lambda i, k: (i, k)),
            pl.BlockSpec((Pk, D), lambda i, k: (0, 0)),
        ]
        kernel = functools.partial(_prop_kernel_resident, tk=tk)
    else:
        in_specs = [
            pl.BlockSpec((tm, tk), lambda i, k: (i, k)),
            pl.BlockSpec((tk, D), lambda i, k: (k, 0)),
        ]
        kernel = _prop_kernel_streamed

    return pl.pallas_call(
        kernel,
        out_shape=(jax.ShapeDtypeStruct((P, D), jnp.float32),
                   jax.ShapeDtypeStruct((P, D), jnp.bfloat16)),
        grid_spec=pltpu.PrefetchScalarGridSpec(
            num_scalar_prefetch=0,
            grid=grid,
            in_specs=in_specs,
            out_specs=(pl.BlockSpec((tm, D), lambda i, k: (i, 0)),
                       pl.BlockSpec((tm, D), lambda i, k: (i, 0))),
        ),
        compiler_params=pltpu.CompilerParams(
            dimension_semantics=("parallel", "arbitrary"),
            vmem_limit_bytes=vmem_limit_bytes),
    )(a_p, e_p)


# --------------------------------------------------------------------------
# Tiled path kernel 2: prefix mean over hop embeddings, tiled over N.
# Hop embeddings are passed as SEPARATE (P, D) inputs (no stack copy).
#   out[i] = mean(hops[0..min(i, L-1)])  with L = number of hop inputs.
# --------------------------------------------------------------------------
def _prefix_mean_kernel(*refs):
    *e_refs, o_ref = refs
    L = len(e_refs)
    acc = e_refs[0][...]
    o_ref[0] = acc
    for h in range(1, 5):                      # static unroll; 5 output rows
        if h < L:
            acc = acc + e_refs[h][...]
            o_ref[h] = acc * jnp.float32(1.0 / (h + 1))
        else:
            o_ref[h] = acc * jnp.float32(1.0 / L)


def pallas_prefix_mean(hops, *, vmem_limit_bytes):
    P, D = hops[0].shape
    big_tr = 2048 if vmem_limit_bytes >= (80 << 20) else 1024
    tr = P if P <= big_tr else big_tr          # P is a multiple of 2048 when big
    assert P % tr == 0
    in_specs = [pl.BlockSpec((tr, D), lambda n: (n, 0)) for _ in hops]
    return pl.pallas_call(
        _prefix_mean_kernel,
        out_shape=jax.ShapeDtypeStruct((5, P, D), jnp.float32),
        grid_spec=pltpu.PrefetchScalarGridSpec(
            num_scalar_prefetch=0,
            grid=(P // tr,),
            in_specs=in_specs,
            out_specs=pl.BlockSpec((5, tr, D), lambda n: (0, n, 0)),
        ),
        compiler_params=pltpu.CompilerParams(
            dimension_semantics=("parallel",),
            vmem_limit_bytes=vmem_limit_bytes),
    )(*hops)


# --------------------------------------------------------------------------
# NGCF module glue (parameter init, make_hop, forward)
# --------------------------------------------------------------------------
def xavier_uniform(key, shape):
    fan_in, fan_out = shape[-2], shape[-1]
    bound = (6.0 / (fan_in + fan_out)) ** 0.5
    return jax.random.uniform(key, shape, jnp.float32, -bound, bound)


def init_ngcf_params(key, n_user, n_item, emb_size, layer_sizes):
    keys = jax.random.split(key, 2 + 4 * len(layer_sizes))
    params = {
        "user_emb": xavier_uniform(keys[0], (n_user, emb_size)),
        "item_emb": xavier_uniform(keys[1], (n_item, emb_size)),
    }
    # W_gc/b_gc/W_bi/b_bi are created (as in __init__) but this NGCF variant's
    # make_hop/forward never uses them (pure LightGCN-style propagation).
    layers = [emb_size] + list(layer_sizes)
    ki = 2
    for k in range(len(layer_sizes)):
        params[f"W_gc_{k}"] = xavier_uniform(keys[ki], (layers[k], layers[k + 1])); ki += 1
        params[f"b_gc_{k}"] = xavier_uniform(keys[ki], (1, layers[k + 1])); ki += 1
        params[f"W_bi_{k}"] = xavier_uniform(keys[ki], (layers[k], layers[k + 1])); ki += 1
        params[f"b_bi_{k}"] = xavier_uniform(keys[ki], (1, layers[k + 1])); ki += 1
    return params


def build_norm_adj(key, n_user, n_item):
    """Dense symmetric-normalized user-item bipartite adjacency (N, N)."""
    r = (jax.random.uniform(key, (n_user, n_item)) < 0.3).astype(jnp.float32)
    N = n_user + n_item
    adj = jnp.zeros((N, N), jnp.float32)
    adj = adj.at[:n_user, n_user:].set(r)
    adj = adj.at[n_user:, :n_user].set(r.T)
    deg = jnp.clip(adj.sum(axis=1), 1.0, None)
    d_inv_sqrt = deg ** -0.5
    return adj * d_inv_sqrt[:, None] * d_inv_sqrt[None, :]


def make_hop(params, norm_adj, n_layers, force_tiled=False):
    """embed[i] = mean(hop_embeddings[0 .. min(i, n_layers)]); shape (5, N, D)."""
    N = norm_adj.shape[0]
    ego = jnp.concatenate([params["user_emb"], params["item_emb"]], axis=0)
    D = ego.shape[1]
    vmem_limit = _vmem_limit_bytes()

    # ---- fused path: A_hat (bf16) fits VMEM -> one kernel, A read once.
    P_f = _round_up(N, 128)
    fused_bytes = 2 * (P_f * P_f * 2) + (5 + 3) * P_f * D * 4 + P_f * D * 2
    if (not force_tiled) and fused_bytes <= int(0.6 * vmem_limit):
        a_p = _pad_rows_cols(norm_adj.astype(jnp.bfloat16), P_f, P_f)
        e0_p = _pad_rows_cols(ego, P_f)
        embed = pallas_make_hop_fused(a_p, e0_p, n_layers=n_layers,
                                      vmem_limit_bytes=vmem_limit)
        return embed[:, :N]

    # ---- tiled path (large graphs).
    tm, tk, P, resident = _plan_propagation(N, D, vmem_limit)
    # Pad + bf16-cast the dominant N^2 operand ONCE, outside the layer loop.
    a_p = _pad_rows_cols(norm_adj.astype(jnp.bfloat16), P, P)
    e0_p = _pad_rows_cols(ego, P)
    hops = [e0_p]
    e_bf = e0_p.astype(jnp.bfloat16)
    for _ in range(min(n_layers, 4)):          # hops beyond 4 never reach output
        e_f32, e_bf = pallas_propagate(a_p, e_bf, tm=tm, tk=tk,
                                       resident=resident,
                                       vmem_limit_bytes=vmem_limit)
        hops.append(e_f32)
    embed = pallas_prefix_mean(hops, vmem_limit_bytes=vmem_limit)
    return embed[:, :N]


@functools.partial(jax.jit,
                   static_argnames=("index", "n_user", "n_layers", "force_tiled"))
def ngcf_forward(params, norm_adj, users, pos_items, neg_items,
                 u_a, p_a, n_a, *, index, n_user, n_layers, force_tiled=False):
    embed = make_hop(params, norm_adj, n_layers, force_tiled=force_tiled)
    if index == 0:
        u_g = embed[u_a, users]
        p_g = embed[p_a, pos_items + n_user]
        n_g = embed[n_a, neg_items + n_user]
    else:
        u_g = embed[u_a, users + n_user]
        p_g = embed[p_a, pos_items]
        n_g = embed[n_a, neg_items]
    return u_g, p_g, n_g


# --------------------------------------------------------------------------
if __name__ == "__main__":
    n_user, n_item = 24, 40              # N = 64 total nodes
    emb_size = 128                       # D (lane-dense)
    layer_sizes = [128, 128, 128, 128]   # 4 propagation layers -> 5 hop embeds
    batch = 8

    root = jax.random.PRNGKey(0)
    k_param, k_adj, k_u, k_p, k_n, k_ua, k_pa, k_na = jax.random.split(root, 8)

    params = init_ngcf_params(k_param, n_user, n_item, emb_size, layer_sizes)
    norm_adj = build_norm_adj(k_adj, n_user, n_item)

    users     = jax.random.randint(k_u,  (batch,), 0, n_user)
    pos_items = jax.random.randint(k_p,  (batch,), 0, n_item)
    neg_items = jax.random.randint(k_n,  (batch,), 0, n_item)
    u_a = jax.random.randint(k_ua, (batch,), 0, 5)
    p_a = jax.random.randint(k_pa, (batch,), 0, 5)
    n_a = jax.random.randint(k_na, (batch,), 0, 5)

    # Path 1: fused (A_hat resident) -- the default for graphs this small.
    u_g, p_g, n_g = ngcf_forward(
        params, norm_adj, users, pos_items, neg_items, u_a, p_a, n_a,
        index=0, n_user=n_user, n_layers=len(layer_sizes))
    jax.block_until_ready((u_g, p_g, n_g))

    # Path 2: force the tiled propagate + prefix-mean kernels (large-graph path).
    u_t, p_t, n_t = ngcf_forward(
        params, norm_adj, users, pos_items, neg_items, u_a, p_a, n_a,
        index=0, n_user=n_user, n_layers=len(layer_sizes), force_tiled=True)
    jax.block_until_ready((u_t, p_t, n_t))

    assert u_g.shape == (batch, emb_size)
    assert p_g.shape == (batch, emb_size)
    assert n_g.shape == (batch, emb_size)

    # Pure-JAX reference (same bf16 rounding of operands, f32 accumulation);
    # loose tolerance accounts for MXU accumulation-order differences.
    a_ref = norm_adj.astype(jnp.bfloat16).astype(jnp.float32)
    ego_r = jnp.concatenate([params["user_emb"], params["item_emb"]], axis=0)
    embs = [ego_r]
    for _ in range(len(layer_sizes)):
        e_b = ego_r.astype(jnp.bfloat16).astype(jnp.float32)
        ego_r = jnp.dot(a_ref, e_b, precision=jax.lax.Precision.HIGHEST)
        embs.append(ego_r)
    stk = jnp.stack(embs[:5], axis=0)
    pm = jnp.cumsum(stk, axis=0) / jnp.arange(1, 6, dtype=jnp.float32)[:, None, None]
    u_ref = pm[u_a, users]
    p_ref = pm[p_a, pos_items + n_user]
    n_ref = pm[n_a, neg_items + n_user]

    for got, ref in ((u_g, u_ref), (p_g, p_ref), (n_g, n_ref),
                     (u_t, u_ref), (p_t, p_ref), (n_t, n_ref)):
        assert bool(jnp.allclose(got, ref, rtol=2e-2, atol=2e-3))

    print("KERNEL_OK")
</pallas_src>

<mosaic_0001>
module attributes {stable_mosaic.version = 11 : i64} {
  func.func @_fused_hop_kernel(%arg0: memref<128x128xbf16, #tpu.memory_space<vmem>>, %arg1: memref<128x128xf32, #tpu.memory_space<vmem>>, %arg2: memref<5x128x128xf32, #tpu.memory_space<vmem>>) attributes {dimension_semantics = [], scalar_prefetch = 0 : i64, scratch_operands = 0 : i64, tpu.core_type = #tpu.core_type<tc>} {
    %c0 = arith.constant 0 : index
    %c0_0 = arith.constant 0 : index
    %0 = vector.load %arg0[%c0, %c0_0] : memref<128x128xbf16, #tpu.memory_space<vmem>>, vector<128x128xbf16>
    %c0_1 = arith.constant 0 : index
    %c0_2 = arith.constant 0 : index
    %1 = vector.load %arg1[%c0_1, %c0_2] : memref<128x128xf32, #tpu.memory_space<vmem>>, vector<128x128xf32>
    %c0_3 = arith.constant 0 : index
    %c0_4 = arith.constant 0 : index
    %c0_5 = arith.constant 0 : index
    %2 = vector.load %arg2[%c0_3, %c0_4, %c0_5] : memref<5x128x128xf32, #tpu.memory_space<vmem>>, vector<1x128x128xf32>
    %3 = vector.shape_cast %2 : vector<1x128x128xf32> to vector<128x128xf32>
    %4 = vector.shape_cast %1 : vector<128x128xf32> to vector<1x128x128xf32>
    tpu.vector_store %arg2[%c0_3, %c0_4, %c0_5], %4 {strides = array<i32>} : memref<5x128x128xf32, #tpu.memory_space<vmem>>, vector<1x128x128xf32>,
    %5 = arith.truncf %1 : vector<128x128xf32> to vector<128x128xbf16>
    %cst = arith.constant dense<0.000000e+00> : vector<128x128xf32>
    %6 = tpu.matmul %0, %5, %cst {dimension_numbers = #tpu.dot_dimension_numbers<[1], [0], [0], [1], [0, 0, 1, 1], [], []>} : vector<128x128xbf16>, vector<128x128xbf16>, vector<128x128xf32> -> vector<128x128xf32>
    %7 = arith.addf %1, %6 : vector<128x128xf32>
    %cst_6 = arith.constant 5.000000e-01 : f32
    %8 = vector.broadcast %cst_6 : f32 to vector<128x128xf32>
    %9 = arith.mulf %7, %8 : vector<128x128xf32>
    %c1 = arith.constant 1 : index
    %c0_7 = arith.constant 0 : index
    %c0_8 = arith.constant 0 : index
    %10 = vector.load %arg2[%c1, %c0_7, %c0_8] : memref<5x128x128xf32, #tpu.memory_space<vmem>>, vector<1x128x128xf32>
    %11 = vector.shape_cast %10 : vector<1x128x128xf32> to vector<128x128xf32>
    %12 = vector.shape_cast %9 : vector<128x128xf32> to vector<1x128x128xf32>
    tpu.vector_store %arg2[%c1, %c0_7, %c0_8], %12 {strides = array<i32>} : memref<5x128x128xf32, #tpu.memory_space<vmem>>, vector<1x128x128xf32>,
    %13 = arith.truncf %6 : vector<128x128xf32> to vector<128x128xbf16>
    %cst_9 = arith.constant dense<0.000000e+00> : vector<128x128xf32>
    %14 = tpu.matmul %0, %13, %cst_9 {dimension_numbers = #tpu.dot_dimension_numbers<[1], [0], [0], [1], [0, 0, 1, 1], [], []>} : vector<128x128xbf16>, vector<128x128xbf16>, vector<128x128xf32> -> vector<128x128xf32>
    %15 = arith.addf %7, %14 : vector<128x128xf32>
    %cst_10 = arith.constant 0.333333343 : f32
    %16 = vector.broadcast %cst_10 : f32 to vector<128x128xf32>
    %17 = arith.mulf %15, %16 : vector<128x128xf32>
    %c2 = arith.constant 2 : index
    %c0_11 = arith.constant 0 : index
    %c0_12 = arith.constant 0 : index
    %18 = vector.load %arg2[%c2, %c0_11, %c0_12] : memref<5x128x128xf32, #tpu.memory_space<vmem>>, vector<1x128x128xf32>
    %19 = vector.shape_cast %18 : vector<1x128x128xf32> to vector<128x128xf32>
    %20 = vector.shape_cast %17 : vector<128x128xf32> to vector<1x128x128xf32>
    tpu.vector_store %arg2[%c2, %c0_11, %c0_12], %20 {strides = array<i32>} : memref<5x128x128xf32, #tpu.memory_space<vmem>>, vector<1x128x128xf32>,
    %21 = arith.truncf %14 : vector<128x128xf32> to vector<128x128xbf16>
    %cst_13 = arith.constant dense<0.000000e+00> : vector<128x128xf32>
    %22 = tpu.matmul %0, %21, %cst_13 {dimension_numbers = #tpu.dot_dimension_numbers<[1], [0], [0], [1], [0, 0, 1, 1], [], []>} : vector<128x128xbf16>, vector<128x128xbf16>, vector<128x128xf32> -> vector<128x128xf32>
    %23 = arith.addf %15, %22 : vector<128x128xf32>
    %cst_14 = arith.constant 2.500000e-01 : f32
    %24 = vector.broadcast %cst_14 : f32 to vector<128x128xf32>
    %25 = arith.mulf %23, %24 : vector<128x128xf32>
    %c3 = arith.constant 3 : index
    %c0_15 = arith.constant 0 : index
    %c0_16 = arith.constant 0 : index
    %26 = vector.load %arg2[%c3, %c0_15, %c0_16] : memref<5x128x128xf32, #tpu.memory_space<vmem>>, vector<1x128x128xf32>
    %27 = vector.shape_cast %26 : vector<1x128x128xf32> to vector<128x128xf32>
    %28 = vector.shape_cast %25 : vector<128x128xf32> to vector<1x128x128xf32>
    tpu.vector_store %arg2[%c3, %c0_15, %c0_16], %28 {strides = array<i32>} : memref<5x128x128xf32, #tpu.memory_space<vmem>>, vector<1x128x128xf32>,
    %29 = arith.truncf %22 : vector<128x128xf32> to vector<128x128xbf16>
    %cst_17 = arith.constant dense<0.000000e+00> : vector<128x128xf32>
    %30 = tpu.matmul %0, %29, %cst_17 {dimension_numbers = #tpu.dot_dimension_numbers<[1], [0], [0], [1], [0, 0, 1, 1], [], []>} : vector<128x128xbf16>, vector<128x128xbf16>, vector<128x128xf32> -> vector<128x128xf32>
    %31 = arith.addf %23, %30 : vector<128x128xf32>
    %cst_18 = arith.constant 2.000000e-01 : f32
    %32 = vector.broadcast %cst_18 : f32 to vector<128x128xf32>
    %33 = arith.mulf %31, %32 : vector<128x128xf32>
    %c4 = arith.constant 4 : index
    %c0_19 = arith.constant 0 : index
    %c0_20 = arith.constant 0 : index
    %34 = vector.load %arg2[%c4, %c0_19, %c0_20] : memref<5x128x128xf32, #tpu.memory_space<vmem>>, vector<1x128x128xf32>
    %35 = vector.shape_cast %34 : vector<1x128x128xf32> to vector<128x128xf32>
    %36 = vector.shape_cast %33 : vector<128x128xf32> to vector<1x128x128xf32>
    tpu.vector_store %arg2[%c4, %c0_19, %c0_20], %36 {strides = array<i32>} : memref<5x128x128xf32, #tpu.memory_space<vmem>>, vector<1x128x128xf32>,
    return
  }
}

</mosaic_0001>

<llo_original>
// kernel: ngcf_forward.1
$region0: #{ngcf_forward.1}
  #allocation0 [shape = 'u32[]', space=smem, size = 0x4, offset = 0x4, fixed_abs, tag = 'smem constant byte address 0x4 - core index']
  #allocation1 [shape = 'u32[144,128]{1,0:T(1,128)}', space=vmem, size = 0x12000, scoped, tag = 'internal scratch']
  %s0 = inlined_call_operand.vmem [shape: bf16[128,128], index: 0, kind: input, shape index: {}]
  %s1 = inlined_call_operand.vmem [shape: f32[128,128], index: 1, kind: input, shape index: {}]
  %s2 = inlined_call_operand.vmem [shape: f32[5,128,128], index: 2, kind: output, shape index: {}]
  %s3 = sld [smem:[#allocation0]]
  $region18: #{ngcf_forward.1} parent=0
    _
  %s5 = ssub.s32 1, %s3
  %s6 = scalar_select 0, %s5, %s3
  // Predicated region
  $region2: #{ngcf_forward.1} parent=0 // pred_check
    _
  $region3: #{ngcf_forward.1} parent=0 // pred_check_branch
    %8 = sbr.rel (0) target = $region5
  $region4: #{ngcf_forward.1} parent=0 // pred_region
    _
  $region5: #{ngcf_forward.1} parent=0 // pred_fallthru
    _
  // Predicated region
  $region6: #{ngcf_forward.1} parent=0 // pred_check
    _
  $region7: #{ngcf_forward.1} parent=0 // pred_check_branch
    %10 = sbr.rel (0) target = $region9
  $region8: #{ngcf_forward.1} parent=0 // pred_region
    _
  $region9: #{ngcf_forward.1} parent=0 // pred_fallthru
    _
  %v12 = vld [vmem:[%s0] sm:$0xf]
  %v13 = vld [vmem:[%s0 + $0x4] sm:$0xf]
  %v14 = vld [vmem:[%s0 + $0x8] sm:$0xf]
  %v15 = vld [vmem:[%s0 + $0xc] sm:$0xf]
  %v16 = vld [vmem:[%s0 + $0x10] sm:$0xf]
  %v17 = vld [vmem:[%s0 + $0x14] sm:$0xf]
  %v18 = vld [vmem:[%s0 + $0x18] sm:$0xf]
  %v19 = vld [vmem:[%s0 + $0x1c] sm:$0xf]
  %v20 = vld [vmem:[%s0 + $0x20] sm:$0xf]
  %v21 = vld [vmem:[%s0 + $0x24] sm:$0xf]
  %v22 = vld [vmem:[%s0 + $0x28] sm:$0xf]
  %v23 = vld [vmem:[%s0 + $0x2c] sm:$0xf]
  %v24 = vld [vmem:[%s0 + $0x30] sm:$0xf]
  %v25 = vld [vmem:[%s0 + $0x34] sm:$0xf]
  %v26 = vld [vmem:[%s0 + $0x38] sm:$0xf]
  %v27 = vld [vmem:[%s0 + $0x3c] sm:$0xf]
  %v28 = vld [vmem:[%s1] sm:$0xff]
  %v29 = vld [vmem:[%s1 + $0x8] sm:$0xff]
  %v30 = vld [vmem:[%s1 + $0x10] sm:$0xff]
  %v31 = vld [vmem:[%s1 + $0x18] sm:$0xff]
  %v32 = vld [vmem:[%s1 + $0x20] sm:$0xff]
  %v33 = vld [vmem:[%s1 + $0x28] sm:$0xff]
  %v34 = vld [vmem:[%s1 + $0x30] sm:$0xff]
  %v35 = vld [vmem:[%s1 + $0x38] sm:$0xff]
  %v36 = vld [vmem:[%s1 + $0x40] sm:$0xff]
  %v37 = vld [vmem:[%s1 + $0x48] sm:$0xff]
  %v38 = vld [vmem:[%s1 + $0x50] sm:$0xff]
  %v39 = vld [vmem:[%s1 + $0x58] sm:$0xff]
  %v40 = vld [vmem:[%s1 + $0x60] sm:$0xff]
  %v41 = vld [vmem:[%s1 + $0x68] sm:$0xff]
  %v42 = vld [vmem:[%s1 + $0x70] sm:$0xff]
  %v43 = vld [vmem:[%s1 + $0x78] sm:$0xff]
  %44 = vst [vmem:[%s2] sm:$0xff] %v28
  %45 = vst [vmem:[%s2 + $0x8] sm:$0xff] %v29
  %46 = vst [vmem:[%s2 + $0x10] sm:$0xff] %v30
  %47 = vst [vmem:[%s2 + $0x18] sm:$0xff] %v31
  %48 = vst [vmem:[%s2 + $0x20] sm:$0xff] %v32
  %49 = vst [vmem:[%s2 + $0x28] sm:$0xff] %v33
  %50 = vst [vmem:[%s2 + $0x30] sm:$0xff] %v34
  %51 = vst [vmem:[%s2 + $0x38] sm:$0xff] %v35
  %52 = vst [vmem:[%s2 + $0x40] sm:$0xff] %v36
  %53 = vst [vmem:[%s2 + $0x48] sm:$0xff] %v37
  %54 = vst [vmem:[%s2 + $0x50] sm:$0xff] %v38
  %55 = vst [vmem:[%s2 + $0x58] sm:$0xff] %v39
  %56 = vst [vmem:[%s2 + $0x60] sm:$0xff] %v40
  %57 = vst [vmem:[%s2 + $0x68] sm:$0xff] %v41
  %58 = vst [vmem:[%s2 + $0x70] sm:$0xff] %v42
  %59 = vst [vmem:[%s2 + $0x78] sm:$0xff] %v43
  %v60 = vpack.c.bf16 %v29, %v28
  %v61 = vpack.c.bf16 %v31, %v30
  %v62 = vpack.c.bf16 %v33, %v32
  %v63 = vpack.c.bf16 %v35, %v34
  %v64 = vpack.c.bf16 %v37, %v36
  %v65 = vpack.c.bf16 %v39, %v38
  %v66 = vpack.c.bf16 %v41, %v40
  %v67 = vpack.c.bf16 %v43, %v42
  %v84 = vunpack.c.l.b16 %v12
  %v85 = vunpack.c.l.b16 %v13
  %v86 = vunpack.c.l.b16 %v14
  %v87 = vunpack.c.l.b16 %v15
  %v88 = vunpack.c.l.b16 %v16
  %v89 = vunpack.c.l.b16 %v17
  %v90 = vunpack.c.l.b16 %v18
  %v91 = vunpack.c.l.b16 %v19
  %v92 = vunpack.c.l.b16 %v20
  %v93 = vunpack.c.l.b16 %v21
  %v94 = vunpack.c.l.b16 %v22
  %v95 = vunpack.c.l.b16 %v23
  %v96 = vunpack.c.l.b16 %v24
  %v97 = vunpack.c.l.b16 %v25
  %v98 = vunpack.c.l.b16 %v26
  %v99 = vunpack.c.l.b16 %v27
  %v100 = vpack.c.b16 %v85, %v84
  %v101 = vpack.c.b16 %v87, %v86
  %v102 = vpack.c.b16 %v89, %v88
  %v103 = vpack.c.b16 %v91, %v90
  %v104 = vpack.c.b16 %v93, %v92
  %v105 = vpack.c.b16 %v95, %v94
  %v106 = vpack.c.b16 %v97, %v96
  %v107 = vpack.c.b16 %v99, %v98
  %116 = vmatprep.subr.bf16.mxu0 0
  %117 = vmatpush1.bf16.msra.mxu0 %v67
  %118 = vmatprep.subr.bf16.mxu0 0
  %119 = vmatpush1.bf16.msra.mxu0 %v66
  %120 = vmatprep.subr.bf16.mxu0 0
  %121 = vmatpush1.bf16.msra.mxu0 %v65
  %122 = vmatprep.subr.bf16.mxu0 0
  %123 = vmatpush1.bf16.msra.mxu0 %v64
  %124 = vmatprep.subr.bf16.mxu0 0
  %125 = vmatpush1.bf16.msra.mxu0 %v63
  %126 = vmatprep.subr.bf16.mxu0 0
  %127 = vmatpush1.bf16.msra.mxu0 %v62
  %128 = vmatprep.subr.bf16.mxu0 0
  %129 = vmatpush1.bf16.msra.mxu0 %v61
  %130 = vmatprep.subr.bf16.mxu0 0
  %131 = vmatpush1.bf16.msra.mxu0 %v60
  %132 = vmatprep.subr.bf16.mxu0 0
  %133 = vmatpush2.bf16.msra.mxu0 0
  %134 = vmatprep.subr.bf16.mxu0 0
  %135 = vmatpush2.bf16.msra.mxu0 0
  %136 = vmatprep.subr.bf16.mxu0 0
  %137 = vmatpush2.bf16.msra.mxu0 0
  %138 = vmatprep.subr.bf16.mxu0 0
  %139 = vmatpush2.bf16.msra.mxu0 0
  %140 = vmatprep.subr.bf16.mxu0 0
  %141 = vmatpush2.bf16.msra.mxu0 0
  %142 = vmatprep.subr.bf16.mxu0 0
  %143 = vmatpush2.bf16.msra.mxu0 0
  %144 = vmatprep.subr.bf16.mxu0 0
  %145 = vmatpush2.bf16.msra.mxu0 0
  %146 = vmatprep.subr.bf16.mxu0 0
  %147 = vmatpush2.bf16.msra.mxu0 0
  %148 = vmatprep.mubr.bf16.mxu0 0
  %149 = vmatmul.mubr.bf16.gmra.mxu0 %v100
  %v150 = vpop.f32.mrf.mxu0
  %v151 = vadd.f32 0.0, %v150
  %v152 = vpop.f32.mrf.mxu0
  %v153 = vpop.f32.mrf.mxu0
  %v154 = vadd.f32 0.0, %v153
  %v155 = vpop.f32.mrf.mxu0
  %156 = vmatprep.mubr.bf16.mxu0 0
  %157 = vmatmul.mubr.bf16.gmra.mxu0 %v101
  %v158 = vpop.f32.mrf.mxu0
  %v159 = vadd.f32 0.0, %v158
  %v160 = vpop.f32.mrf.mxu0
  %v161 = vpop.f32.mrf.mxu0
  %v162 = vadd.f32 0.0, %v161
  %v163 = vpop.f32.mrf.mxu0
  %164 = vmatprep.mubr.bf16.mxu0 0
  %165 = vmatmul.mubr.bf16.gmra.mxu0 %v102
  %v166 = vpop.f32.mrf.mxu0
  %v167 = vadd.f32 0.0, %v166
  %v168 = vpop.f32.mrf.mxu0
  %v169 = vpop.f32.mrf.mxu0
  %v170 = vadd.f32 0.0, %v169
  %v171 = vpop.f32.mrf.mxu0
  %172 = vmatprep.mubr.bf16.mxu0 0
  %173 = vmatmul.mubr.bf16.gmra.mxu0 %v103
  %v174 = vpop.f32.mrf.mxu0
  %v175 = vadd.f32 0.0, %v174
  %v176 = vpop.f32.mrf.mxu0
  %v177 = vpop.f32.mrf.mxu0
  %v178 = vadd.f32 0.0, %v177
  %v179 = vpop.f32.mrf.mxu0
  %180 = vmatprep.mubr.bf16.mxu0 0
  %181 = vmatmul.mubr.bf16.gmra.mxu0 %v104
  %v182 = vpop.f32.mrf.mxu0
  %v183 = vadd.f32 0.0, %v182
  %v184 = vpop.f32.mrf.mxu0
  %v185 = vpop.f32.mrf.mxu0
  %v186 = vadd.f32 0.0, %v185
  %v187 = vpop.f32.mrf.mxu0
  %188 = vmatprep.mubr.bf16.mxu0 0
  %189 = vmatmul.mubr.bf16.gmra.mxu0 %v105
  %v190 = vpop.f32.mrf.mxu0
  %v191 = vadd.f32 0.0, %v190
  %v192 = vpop.f32.mrf.mxu0
  %v193 = vpop.f32.mrf.mxu0
  %v194 = vadd.f32 0.0, %v193
  %v195 = vpop.f32.mrf.mxu0
  %196 = vmatprep.mubr.bf16.mxu0 0
  %197 = vmatmul.mubr.bf16.gmra.mxu0 %v106
  %v198 = vpop.f32.mrf.mxu0
  %v199 = vadd.f32 0.0, %v198
  %v200 = vpop.f32.mrf.mxu0
  %v201 = vpop.f32.mrf.mxu0
  %v202 = vadd.f32 0.0, %v201
  %v203 = vpop.f32.mrf.mxu0
  %204 = vmatprep.mubr.bf16.mxu0 0
  %205 = vmatmul.mubr.bf16.gmra.mxu0 %v107
  %v206 = vpop.f32.mrf.mxu0
  %v207 = vadd.f32 0.0, %v206
  %v208 = vpop.f32.mrf.mxu0
  %v209 = vpop.f32.mrf.mxu0
  %v210 = vadd.f32 0.0, %v209
  %v211 = vpop.f32.mrf.mxu0
  %212 = vdwg.mxu0
  %v213 = vadd.f32 %v28, %v151
  %v214 = vadd.f32 %v29, %v154
  %v215 = vadd.f32 %v30, %v159
  %v216 = vadd.f32 %v31, %v162
  %v217 = vadd.f32 %v32, %v167
  %v218 = vadd.f32 %v33, %v170
  %v219 = vadd.f32 %v34, %v175
  %v220 = vadd.f32 %v35, %v178
  %v221 = vadd.f32 %v36, %v183
  %v222 = vadd.f32 %v37, %v186
  %v223 = vadd.f32 %v38, %v191
  %v224 = vadd.f32 %v39, %v194
  %v225 = vadd.f32 %v40, %v199
  %v226 = vadd.f32 %v41, %v202
  %v227 = vadd.f32 %v42, %v207
  %v228 = vadd.f32 %v43, %v210
  %v229 = vmul.f32 %v213, 0.5
  %v230 = vmul.f32 %v214, 0.5
  %v231 = vmul.f32 %v215, 0.5
  %v232 = vmul.f32 %v216, 0.5
  %v233 = vmul.f32 %v217, 0.5
  %v234 = vmul.f32 %v218, 0.5
  %v235 = vmul.f32 %v219, 0.5
  %v236 = vmul.f32 %v220, 0.5
  %v237 = vmul.f32 %v221, 0.5
  %v238 = vmul.f32 %v222, 0.5
  %v239 = vmul.f32 %v223, 0.5
  %v240 = vmul.f32 %v224, 0.5
  %v241 = vmul.f32 %v225, 0.5
  %v242 = vmul.f32 %v226, 0.5
  %v243 = vmul.f32 %v227, 0.5
  %v244 = vmul.f32 %v228, 0.5
  %s245 = scalar_lea.vmem %s2, 128
  %246 = vst [vmem:[%s245] sm:$0xff] %v229
  %247 = vst [vmem:[%s245 + $0x8] sm:$0xff] %v230
  %248 = vst [vmem:[%s245 + $0x10] sm:$0xff] %v231
  %249 = vst [vmem:[%s245 + $0x18] sm:$0xff] %v232
  %250 = vst [vmem:[%s245 + $0x20] sm:$0xff] %v233
  %251 = vst [vmem:[%s245 + $0x28] sm:$0xff] %v234
  %252 = vst [vmem:[%s245 + $0x30] sm:$0xff] %v235
  %253 = vst [vmem:[%s245 + $0x38] sm:$0xff] %v236
  %254 = vst [vmem:[%s245 + $0x40] sm:$0xff] %v237
  %255 = vst [vmem:[%s245 + $0x48] sm:$0xff] %v238
  %256 = vst [vmem:[%s245 + $0x50] sm:$0xff] %v239
  %257 = vst [vmem:[%s245 + $0x58] sm:$0xff] %v240
  %258 = vst [vmem:[%s245 + $0x60] sm:$0xff] %v241
  %259 = vst [vmem:[%s245 + $0x68] sm:$0xff] %v242
  %260 = vst [vmem:[%s245 + $0x70] sm:$0xff] %v243
  %261 = vst [vmem:[%s245 + $0x78] sm:$0xff] %v244
  %v262 = vpack.c.bf16 %v154, %v151
  %v263 = vpack.c.bf16 %v162, %v159
  %v264 = vpack.c.bf16 %v170, %v167
  %v265 = vpack.c.bf16 %v178, %v175
  %v266 = vpack.c.bf16 %v186, %v183
  %v267 = vpack.c.bf16 %v194, %v191
  %v268 = vpack.c.bf16 %v202, %v199
  %v269 = vpack.c.bf16 %v210, %v207
  %270 = vmatprep.subr.bf16.mxu0 0
  %271 = vmatpush1.bf16.msra.mxu0 %v269
  %272 = vmatprep.subr.bf16.mxu0 0
  %273 = vmatpush1.bf16.msra.mxu0 %v268
  %274 = vmatprep.subr.bf16.mxu0 0
  %275 = vmatpush1.bf16.msra.mxu0 %v267
  %276 = vmatprep.subr.bf16.mxu0 0
  %277 = vmatpush1.bf16.msra.mxu0 %v266
  %278 = vmatprep.subr.bf16.mxu0 0
  %279 = vmatpush1.bf16.msra.mxu0 %v265
  %280 = vmatprep.subr.bf16.mxu0 0
  %281 = vmatpush1.bf16.msra.mxu0 %v264
  %282 = vmatprep.subr.bf16.mxu0 0
  %283 = vmatpush1.bf16.msra.mxu0 %v263
  %284 = vmatprep.subr.bf16.mxu0 0
  %285 = vmatpush1.bf16.msra.mxu0 %v262
  %286 = vmatprep.subr.bf16.mxu0 0
  %287 = vmatpush2.bf16.msra.mxu0 0
  %288 = vmatprep.subr.bf16.mxu0 0
  %289 = vmatpush2.bf16.msra.mxu0 0
  %290 = vmatprep.subr.bf16.mxu0 0
  %291 = vmatpush2.bf16.msra.mxu0 0
  %292 = vmatprep.subr.bf16.mxu0 0
  %293 = vmatpush2.bf16.msra.mxu0 0
  %294 = vmatprep.subr.bf16.mxu0 0
  %295 = vmatpush2.bf16.msra.mxu0 0
  %296 = vmatprep.subr.bf16.mxu0 0
  %297 = vmatpush2.bf16.msra.mxu0 0
  %298 = vmatprep.subr.bf16.mxu0 0
  %299 = vmatpush2.bf16.msra.mxu0 0
  %300 = vmatprep.subr.bf16.mxu0 0
  %301 = vmatpush2.bf16.msra.mxu0 0
  %302 = vmatprep.mubr.bf16.mxu0 0
  %303 = vmatmul.mubr.bf16.gmra.mxu0 %v100
  %v304 = vpop.f32.mrf.mxu0
  %v305 = vadd.f32 0.0, %v304
  %v306 = vpop.f32.mrf.mxu0
  %v307 = vpop.f32.mrf.mxu0
  %v308 = vadd.f32 0.0, %v307
  %v309 = vpop.f32.mrf.mxu0
  %310 = vmatprep.mubr.bf16.mxu0 0
  %311 = vmatmul.mubr.bf16.gmra.mxu0 %v101
  %v312 = vpop.f32.mrf.mxu0
  %v313 = vadd.f32 0.0, %v312
  %v314 = vpop.f32.mrf.mxu0
  %v315 = vpop.f32.mrf.mxu0
  %v316 = vadd.f32 0.0, %v315
  %v317 = vpop.f32.mrf.mxu0
  %318 = vmatprep.mubr.bf16.mxu0 0
  %319 = vmatmul.mubr.bf16.gmra.mxu0 %v102
  %v320 = vpop.f32.mrf.mxu0
  %v321 = vadd.f32 0.0, %v320
  %v322 = vpop.f32.mrf.mxu0
  %v323 = vpop.f32.mrf.mxu0
  %v324 = vadd.f32 0.0, %v323
  %v325 = vpop.f32.mrf.mxu0
  %326 = vmatprep.mubr.bf16.mxu0 0
  %327 = vmatmul.mubr.bf16.gmra.mxu0 %v103
  %v328 = vpop.f32.mrf.mxu0
  %v329 = vadd.f32 0.0, %v328
  %v330 = vpop.f32.mrf.mxu0
  %v331 = vpop.f32.mrf.mxu0
  %v332 = vadd.f32 0.0, %v331
  %v333 = vpop.f32.mrf.mxu0
  %334 = vmatprep.mubr.bf16.mxu0 0
  %335 = vmatmul.mubr.bf16.gmra.mxu0 %v104
  %v336 = vpop.f32.mrf.mxu0
  %v337 = vadd.f32 0.0, %v336
  %v338 = vpop.f32.mrf.mxu0
  %v339 = vpop.f32.mrf.mxu0
  %v340 = vadd.f32 0.0, %v339
  %v341 = vpop.f32.mrf.mxu0
  %342 = vmatprep.mubr.bf16.mxu0 0
  %343 = vmatmul.mubr.bf16.gmra.mxu0 %v105
  %v344 = vpop.f32.mrf.mxu0
  %v345 = vadd.f32 0.0, %v344
  %v346 = vpop.f32.mrf.mxu0
  %v347 = vpop.f32.mrf.mxu0
  %v348 = vadd.f32 0.0, %v347
  %v349 = vpop.f32.mrf.mxu0
  %350 = vmatprep.mubr.bf16.mxu0 0
  %351 = vmatmul.mubr.bf16.gmra.mxu0 %v106
  %v352 = vpop.f32.mrf.mxu0
  %v353 = vadd.f32 0.0, %v352
  %v354 = vpop.f32.mrf.mxu0
  %v355 = vpop.f32.mrf.mxu0
  %v356 = vadd.f32 0.0, %v355
  %v357 = vpop.f32.mrf.mxu0
  %358 = vmatprep.mubr.bf16.mxu0 0
  %359 = vmatmul.mubr.bf16.gmra.mxu0 %v107
  %v360 = vpop.f32.mrf.mxu0
  %v361 = vadd.f32 0.0, %v360
  %v362 = vpop.f32.mrf.mxu0
  %v363 = vpop.f32.mrf.mxu0
  %v364 = vadd.f32 0.0, %v363
  %v365 = vpop.f32.mrf.mxu0
  %366 = vdwg.mxu0
  %v367 = vadd.f32 %v213, %v305
  %v368 = vadd.f32 %v214, %v308
  %v369 = vadd.f32 %v215, %v313
  %v370 = vadd.f32 %v216, %v316
  %v371 = vadd.f32 %v217, %v321
  %v372 = vadd.f32 %v218, %v324
  %v373 = vadd.f32 %v219, %v329
  %v374 = vadd.f32 %v220, %v332
  %v375 = vadd.f32 %v221, %v337
  %v376 = vadd.f32 %v222, %v340
  %v377 = vadd.f32 %v223, %v345
  %v378 = vadd.f32 %v224, %v348
  %v379 = vadd.f32 %v225, %v353
  %v380 = vadd.f32 %v226, %v356
  %v381 = vadd.f32 %v227, %v361
  %v382 = vadd.f32 %v228, %v364
  %v383 = vmul.f32 %v367, 0.33333334
  %v384 = vmul.f32 %v368, 0.33333334
  %v385 = vmul.f32 %v369, 0.33333334
  %v386 = vmul.f32 %v370, 0.33333334
  %v387 = vmul.f32 %v371, 0.33333334
  %v388 = vmul.f32 %v372, 0.33333334
  %v389 = vmul.f32 %v373, 0.33333334
  %v390 = vmul.f32 %v374, 0.33333334
  %v391 = vmul.f32 %v375, 0.33333334
  %v392 = vmul.f32 %v376, 0.33333334
  %v393 = vmul.f32 %v377, 0.33333334
  %v394 = vmul.f32 %v378, 0.33333334
  %v395 = vmul.f32 %v379, 0.33333334
  %v396 = vmul.f32 %v380, 0.33333334
  %v397 = vmul.f32 %v381, 0.33333334
  %v398 = vmul.f32 %v382, 0.33333334
  %s399 = scalar_lea.vmem %s2, 256
  %400 = vst [vmem:[%s399] sm:$0xff] %v383
  %401 = vst [vmem:[%s399 + $0x8] sm:$0xff] %v384
  %402 = vst [vmem:[%s399 + $0x10] sm:$0xff] %v385
  %403 = vst [vmem:[%s399 + $0x18] sm:$0xff] %v386
  %404 = vst [vmem:[%s399 + $0x20] sm:$0xff] %v387
  %405 = vst [vmem:[%s399 + $0x28] sm:$0xff] %v388
  %406 = vst [vmem:[%s399 + $0x30] sm:$0xff] %v389
  %407 = vst [vmem:[%s399 + $0x38] sm:$0xff] %v390
  %408 = vst [vmem:[%s399 + $0x40] sm:$0xff] %v391
  %409 = vst [vmem:[%s399 + $0x48] sm:$0xff] %v392
  %410 = vst [vmem:[%s399 + $0x50] sm:$0xff] %v393
  %411 = vst [vmem:[%s399 + $0x58] sm:$0xff] %v394
  %412 = vst [vmem:[%s399 + $0x60] sm:$0xff] %v395
  %413 = vst [vmem:[%s399 + $0x68] sm:$0xff] %v396
  %414 = vst [vmem:[%s399 + $0x70] sm:$0xff] %v397
  %415 = vst [vmem:[%s399 + $0x78] sm:$0xff] %v398
  %v416 = vpack.c.bf16 %v308, %v305
  %v417 = vpack.c.bf16 %v316, %v313
  %v418 = vpack.c.bf16 %v324, %v321
  %v419 = vpack.c.bf16 %v332, %v329
  %v420 = vpack.c.bf16 %v340, %v337
  %v421 = vpack.c.bf16 %v348, %v345
  %v422 = vpack.c.bf16 %v356, %v353
  %v423 = vpack.c.bf16 %v364, %v361
  %424 = vmatprep.subr.bf16.mxu0 0
  %425 = vmatpush1.bf16.msra.mxu0 %v423
  %426 = vmatprep.subr.bf16.mxu0 0
  %427 = vmatpush1.bf16.msra.mxu0 %v422
  %428 = vmatprep.subr.bf16.mxu0 0
  %429 = vmatpush1.bf16.msra.mxu0 %v421
  %430 = vmatprep.subr.bf16.mxu0 0
  %431 = vmatpush1.bf16.msra.mxu0 %v420
  %432 = vmatprep.subr.bf16.mxu0 0
  %433 = vmatpush1.bf16.msra.mxu0 %v419
  %434 = vmatprep.subr.bf16.mxu0 0
  %435 = vmatpush1.bf16.msra.mxu0 %v418
  %436 = vmatprep.subr.bf16.mxu0 0
  %437 = vmatpush1.bf16.msra.mxu0 %v417
  %438 = vmatprep.subr.bf16.mxu0 0
  %439 = vmatpush1.bf16.msra.mxu0 %v416
  %440 = vmatprep.subr.bf16.mxu0 0
  %441 = vmatpush2.bf16.msra.mxu0 0
  %442 = vmatprep.subr.bf16.mxu0 0
  %443 = vmatpush2.bf16.msra.mxu0 0
  %444 = vmatprep.subr.bf16.mxu0 0
  %445 = vmatpush2.bf16.msra.mxu0 0
  %446 = vmatprep.subr.bf16.mxu0 0
  %447 = vmatpush2.bf16.msra.mxu0 0
  %448 = vmatprep.subr.bf16.mxu0 0
  %449 = vmatpush2.bf16.msra.mxu0 0
  %450 = vmatprep.subr.bf16.mxu0 0
  %451 = vmatpush2.bf16.msra.mxu0 0
  %452 = vmatprep.subr.bf16.mxu0 0
  %453 = vmatpush2.bf16.msra.mxu0 0
  %454 = vmatprep.subr.bf16.mxu0 0
  %455 = vmatpush2.bf16.msra.mxu0 0
  %456 = vmatprep.mubr.bf16.mxu0 0
  %457 = vmatmul.mubr.bf16.gmra.mxu0 %v100
  %v458 = vpop.f32.mrf.mxu0
  %v459 = vadd.f32 0.0, %v458
  %v460 = vpop.f32.mrf.mxu0
  %v461 = vpop.f32.mrf.mxu0
  %v462 = vadd.f32 0.0, %v461
  %v463 = vpop.f32.mrf.mxu0
  %464 = vmatprep.mubr.bf16.mxu0 0
  %465 = vmatmul.mubr.bf16.gmra.mxu0 %v101
  %v466 = vpop.f32.mrf.mxu0
  %v467 = vadd.f32 0.0, %v466
  %v468 = vpop.f32.mrf.mxu0
  %v469 = vpop.f32.mrf.mxu0
  %v470 = vadd.f32 0.0, %v469
  %v471 = vpop.f32.mrf.mxu0
  %472 = vmatprep.mubr.bf16.mxu0 0
  %473 = vmatmul.mubr.bf16.gmra.mxu0 %v102
  %v474 = vpop.f32.mrf.mxu0
  %v475 = vadd.f32 0.0, %v474
  %v476 = vpop.f32.mrf.mxu0
  %v477 = vpop.f32.mrf.mxu0
  %v478 = vadd.f32 0.0, %v477
  %v479 = vpop.f32.mrf.mxu0
  %480 = vmatprep.mubr.bf16.mxu0 0
  %481 = vmatmul.mubr.bf16.gmra.mxu0 %v103
  %v482 = vpop.f32.mrf.mxu0
  %v483 = vadd.f32 0.0, %v482
  %v484 = vpop.f32.mrf.mxu0
  %v485 = vpop.f32.mrf.mxu0
  %v486 = vadd.f32 0.0, %v485
  %v487 = vpop.f32.mrf.mxu0
  %488 = vmatprep.mubr.bf16.mxu0 0
  %489 = vmatmul.mubr.bf16.gmra.mxu0 %v104
  %v490 = vpop.f32.mrf.mxu0
  %v491 = vadd.f32 0.0, %v490
  %v492 = vpop.f32.mrf.mxu0
  %v493 = vpop.f32.mrf.mxu0
  %v494 = vadd.f32 0.0, %v493
  %v495 = vpop.f32.mrf.mxu0
  %496 = vmatprep.mubr.bf16.mxu0 0
  %497 = vmatmul.mubr.bf16.gmra.mxu0 %v105
  %v498 = vpop.f32.mrf.mxu0
  %v499 = vadd.f32 0.0, %v498
  %v500 = vpop.f32.mrf.mxu0
  %v501 = vpop.f32.mrf.mxu0
  %v502 = vadd.f32 0.0, %v501
  %v503 = vpop.f32.mrf.mxu0
  %504 = vmatprep.mubr.bf16.mxu0 0
  %505 = vmatmul.mubr.bf16.gmra.mxu0 %v106
  %v506 = vpop.f32.mrf.mxu0
  %v507 = vadd.f32 0.0, %v506
  %v508 = vpop.f32.mrf.mxu0
  %v509 = vpop.f32.mrf.mxu0
  %v510 = vadd.f32 0.0, %v509
  %v511 = vpop.f32.mrf.mxu0
  %512 = vmatprep.mubr.bf16.mxu0 0
  %513 = vmatmul.mubr.bf16.gmra.mxu0 %v107
  %v514 = vpop.f32.mrf.mxu0
  %v515 = vadd.f32 0.0, %v514
  %v516 = vpop.f32.mrf.mxu0
  %v517 = vpop.f32.mrf.mxu0
  %v518 = vadd.f32 0.0, %v517
  %v519 = vpop.f32.mrf.mxu0
  %520 = vdwg.mxu0
  %v521 = vadd.f32 %v367, %v459
  %v522 = vadd.f32 %v368, %v462
  %v523 = vadd.f32 %v369, %v467
  %v524 = vadd.f32 %v370, %v470
  %v525 = vadd.f32 %v371, %v475
  %v526 = vadd.f32 %v372, %v478
  %v527 = vadd.f32 %v373, %v483
  %v528 = vadd.f32 %v374, %v486
  %v529 = vadd.f32 %v375, %v491
  %v530 = vadd.f32 %v376, %v494
  %v531 = vadd.f32 %v377, %v499
  %v532 = vadd.f32 %v378, %v502
  %v533 = vadd.f32 %v379, %v507
  %v534 = vadd.f32 %v380, %v510
  %v535 = vadd.f32 %v381, %v515
  %v536 = vadd.f32 %v382, %v518
  %v537 = vmul.f32 %v521, 0.25
  %v538 = vmul.f32 %v522, 0.25
  %v539 = vmul.f32 %v523, 0.25
  %v540 = vmul.f32 %v524, 0.25
  %v541 = vmul.f32 %v525, 0.25
  %v542 = vmul.f32 %v526, 0.25
  %v543 = vmul.f32 %v527, 0.25
  %v544 = vmul.f32 %v528, 0.25
  %v545 = vmul.f32 %v529, 0.25
  %v546 = vmul.f32 %v530, 0.25
  %v547 = vmul.f32 %v531, 0.25
  %v548 = vmul.f32 %v532, 0.25
  %v549 = vmul.f32 %v533, 0.25
  %v550 = vmul.f32 %v534, 0.25
  %v551 = vmul.f32 %v535, 0.25
  %v552 = vmul.f32 %v536, 0.25
  %s553 = scalar_lea.vmem %s2, 384
  %554 = vst [vmem:[%s553] sm:$0xff] %v537
  %555 = vst [vmem:[%s553 + $0x8] sm:$0xff] %v538
  %556 = vst [vmem:[%s553 + $0x10] sm:$0xff] %v539
  %557 = vst [vmem:[%s553 + $0x18] sm:$0xff] %v540
  %558 = vst [vmem:[%s553 + $0x20] sm:$0xff] %v541
  %559 = vst [vmem:[%s553 + $0x28] sm:$0xff] %v542
  %560 = vst [vmem:[%s553 + $0x30] sm:$0xff] %v543
  %561 = vst [vmem:[%s553 + $0x38] sm:$0xff] %v544
  %562 = vst [vmem:[%s553 + $0x40] sm:$0xff] %v545
  %563 = vst [vmem:[%s553 + $0x48] sm:$0xff] %v546
  %564 = vst [vmem:[%s553 + $0x50] sm:$0xff] %v547
  %565 = vst [vmem:[%s553 + $0x58] sm:$0xff] %v548
  %566 = vst [vmem:[%s553 + $0x60] sm:$0xff] %v549
  %567 = vst [vmem:[%s553 + $0x68] sm:$0xff] %v550
  %568 = vst [vmem:[%s553 + $0x70] sm:$0xff] %v551
  %569 = vst [vmem:[%s553 + $0x78] sm:$0xff] %v552
  %v570 = vpack.c.bf16 %v462, %v459
  %v571 = vpack.c.bf16 %v470, %v467
  %v572 = vpack.c.bf16 %v478, %v475
  %v573 = vpack.c.bf16 %v486, %v483
  %v574 = vpack.c.bf16 %v494, %v491
  %v575 = vpack.c.bf16 %v502, %v499
  %v576 = vpack.c.bf16 %v510, %v507
  %v577 = vpack.c.bf16 %v518, %v515
  %578 = vmatprep.subr.bf16.mxu0 0
  %579 = vmatpush1.bf16.msra.mxu0 %v577
  %580 = vmatprep.subr.bf16.mxu0 0
  %581 = vmatpush1.bf16.msra.mxu0 %v576
  %582 = vmatprep.subr.bf16.mxu0 0
  %583 = vmatpush1.bf16.msra.mxu0 %v575
  %584 = vmatprep.subr.bf16.mxu0 0
  %585 = vmatpush1.bf16.msra.mxu0 %v574
  %586 = vmatprep.subr.bf16.mxu0 0
  %587 = vmatpush1.bf16.msra.mxu0 %v573
  %588 = vmatprep.subr.bf16.mxu0 0
  %589 = vmatpush1.bf16.msra.mxu0 %v572
  %590 = vmatprep.subr.bf16.mxu0 0
  %591 = vmatpush1.bf16.msra.mxu0 %v571
  %592 = vmatprep.subr.bf16.mxu0 0
  %593 = vmatpush1.bf16.msra.mxu0 %v570
  %594 = vmatprep.subr.bf16.mxu0 0
  %595 = vmatpush2.bf16.msra.mxu0 0
  %596 = vmatprep.subr.bf16.mxu0 0
  %597 = vmatpush2.bf16.msra.mxu0 0
  %598 = vmatprep.subr.bf16.mxu0 0
  %599 = vmatpush2.bf16.msra.mxu0 0
  %600 = vmatprep.subr.bf16.mxu0 0
  %601 = vmatpush2.bf16.msra.mxu0 0
  %602 = vmatprep.subr.bf16.mxu0 0
  %603 = vmatpush2.bf16.msra.mxu0 0
  %604 = vmatprep.subr.bf16.mxu0 0
  %605 = vmatpush2.bf16.msra.mxu0 0
  %606 = vmatprep.subr.bf16.mxu0 0
  %607 = vmatpush2.bf16.msra.mxu0 0
  %608 = vmatprep.subr.bf16.mxu0 0
  %609 = vmatpush2.bf16.msra.mxu0 0
  %610 = vmatprep.mubr.bf16.mxu0 0
  %611 = vmatmul.mubr.bf16.gmra.mxu0 %v100
  %v612 = vpop.f32.mrf.mxu0
  %v613 = vadd.f32 0.0, %v612
  %v614 = vpop.f32.mrf.mxu0
  %v615 = vpop.f32.mrf.mxu0
  %v616 = vadd.f32 0.0, %v615
  %v617 = vpop.f32.mrf.mxu0
  %618 = vmatprep.mubr.bf16.mxu0 0
  %619 = vmatmul.mubr.bf16.gmra.mxu0 %v101
  %v620 = vpop.f32.mrf.mxu0
  %v621 = vadd.f32 0.0, %v620
  %v622 = vpop.f32.mrf.mxu0
  %v623 = vpop.f32.mrf.mxu0
  %v624 = vadd.f32 0.0, %v623
  %v625 = vpop.f32.mrf.mxu0
  %626 = vmatprep.mubr.bf16.mxu0 0
  %627 = vmatmul.mubr.bf16.gmra.mxu0 %v102
  %v628 = vpop.f32.mrf.mxu0
  %v629 = vadd.f32 0.0, %v628
  %v630 = vpop.f32.mrf.mxu0
  %v631 = vpop.f32.mrf.mxu0
  %v632 = vadd.f32 0.0, %v631
  %v633 = vpop.f32.mrf.mxu0
  %634 = vmatprep.mubr.bf16.mxu0 0
  %635 = vmatmul.mubr.bf16.gmra.mxu0 %v103
  %v636 = vpop.f32.mrf.mxu0
  %v637 = vadd.f32 0.0, %v636
  %v638 = vpop.f32.mrf.mxu0
  %v639 = vpop.f32.mrf.mxu0
  %v640 = vadd.f32 0.0, %v639
  %v641 = vpop.f32.mrf.mxu0
  %642 = vmatprep.mubr.bf16.mxu0 0
  %643 = vmatmul.mubr.bf16.gmra.mxu0 %v104
  %v644 = vpop.f32.mrf.mxu0
  %v645 = vadd.f32 0.0, %v644
  %v646 = vpop.f32.mrf.mxu0
  %v647 = vpop.f32.mrf.mxu0
  %v648 = vadd.f32 0.0, %v647
  %v649 = vpop.f32.mrf.mxu0
  %650 = vmatprep.mubr.bf16.mxu0 0
  %651 = vmatmul.mubr.bf16.gmra.mxu0 %v105
  %v652 = vpop.f32.mrf.mxu0
  %v653 = vadd.f32 0.0, %v652
  %v654 = vpop.f32.mrf.mxu0
  %v655 = vpop.f32.mrf.mxu0
  %v656 = vadd.f32 0.0, %v655
  %v657 = vpop.f32.mrf.mxu0
  %658 = vmatprep.mubr.bf16.mxu0 0
  %659 = vmatmul.mubr.bf16.gmra.mxu0 %v106
  %v660 = vpop.f32.mrf.mxu0
  %v661 = vadd.f32 0.0, %v660
  %v662 = vpop.f32.mrf.mxu0
  %v663 = vpop.f32.mrf.mxu0
  %v664 = vadd.f32 0.0, %v663
  %v665 = vpop.f32.mrf.mxu0
  %666 = vmatprep.mubr.bf16.mxu0 0
  %667 = vmatmul.mubr.bf16.gmra.mxu0 %v107
  %v668 = vpop.f32.mrf.mxu0
  %v669 = vadd.f32 0.0, %v668
  %v670 = vpop.f32.mrf.mxu0
  %v671 = vpop.f32.mrf.mxu0
  %v672 = vadd.f32 0.0, %v671
  %v673 = vpop.f32.mrf.mxu0
  %674 = vdwg.mxu0
  %v675 = vadd.f32 %v521, %v613
  %v676 = vadd.f32 %v522, %v616
  %v677 = vadd.f32 %v523, %v621
  %v678 = vadd.f32 %v524, %v624
  %v679 = vadd.f32 %v525, %v629
  %v680 = vadd.f32 %v526, %v632
  %v681 = vadd.f32 %v527, %v637
  %v682 = vadd.f32 %v528, %v640
  %v683 = vadd.f32 %v529, %v645
  %v684 = vadd.f32 %v530, %v648
  %v685 = vadd.f32 %v531, %v653
  %v686 = vadd.f32 %v532, %v656
  %v687 = vadd.f32 %v533, %v661
  %v688 = vadd.f32 %v534, %v664
  %v689 = vadd.f32 %v535, %v669
  %v690 = vadd.f32 %v536, %v672
  %v691 = vmul.f32 %v675, 0.2
  %v692 = vmul.f32 %v676, 0.2
  %v693 = vmul.f32 %v677, 0.2
  %v694 = vmul.f32 %v678, 0.2
  %v695 = vmul.f32 %v679, 0.2
  %v696 = vmul.f32 %v680, 0.2
  %v697 = vmul.f32 %v681, 0.2
  %v698 = vmul.f32 %v682, 0.2
  %v699 = vmul.f32 %v683, 0.2
  %v700 = vmul.f32 %v684, 0.2
  %v701 = vmul.f32 %v685, 0.2
  %v702 = vmul.f32 %v686, 0.2
  %v703 = vmul.f32 %v687, 0.2
  %v704 = vmul.f32 %v688, 0.2
  %v705 = vmul.f32 %v689, 0.2
  %v706 = vmul.f32 %v690, 0.2
  %s707 = scalar_lea.vmem %s2, 512
  %708 = vst [vmem:[%s707] sm:$0xff] %v691
  %709 = vst [vmem:[%s707 + $0x8] sm:$0xff] %v692
  %710 = vst [vmem:[%s707 + $0x10] sm:$0xff] %v693
  %711 = vst [vmem:[%s707 + $0x18] sm:$0xff] %v694
  %712 = vst [vmem:[%s707 + $0x20] sm:$0xff] %v695
  %713 = vst [vmem:[%s707 + $0x28] sm:$0xff] %v696
  %714 = vst [vmem:[%s707 + $0x30] sm:$0xff] %v697
  %715 = vst [vmem:[%s707 + $0x38] sm:$0xff] %v698
  %716 = vst [vmem:[%s707 + $0x40] sm:$0xff] %v699
  %717 = vst [vmem:[%s707 + $0x48] sm:$0xff] %v700
  %718 = vst [vmem:[%s707 + $0x50] sm:$0xff] %v701
  %719 = vst [vmem:[%s707 + $0x58] sm:$0xff] %v702
  %720 = vst [vmem:[%s707 + $0x60] sm:$0xff] %v703
  %721 = vst [vmem:[%s707 + $0x68] sm:$0xff] %v704
  %722 = vst [vmem:[%s707 + $0x70] sm:$0xff] %v705
  %723 = vst [vmem:[%s707 + $0x78] sm:$0xff] %v706
  // Predicated region
  $region10: #{ngcf_forward.1} parent=0 // pred_check
    _
  $region11: #{ngcf_forward.1} parent=0 // pred_check_branch
    %725 = sbr.rel (0) target = $region13
  $region12: #{ngcf_forward.1} parent=0 // pred_region
    _
  $region13: #{ngcf_forward.1} parent=0 // pred_fallthru
    _
  // Predicated region
  $region14: #{ngcf_forward.1} parent=0 // pred_check
    _
  $region15: #{ngcf_forward.1} parent=0 // pred_check_branch
    %727 = sbr.rel (0) target = $region17
  $region16: #{ngcf_forward.1} parent=0 // pred_region
    _
  $region17: #{ngcf_forward.1} parent=0 // pred_fallthru
    _

</llo_original>
